<compile_context>
chip_gen: v7x
topology: tpu7x:2x2x1
jax: 0.10.0
libtpu: 0.0.40
codegen_flags: <defaults>
</compile_context>

<pallas_src>
import functools

import jax
import jax.numpy as jnp
from jax import lax
from jax.experimental import pallas as pl
from jax.experimental.pallas import tpu as pltpu

NEG_BIG = -1e30   # large finite negative: avoids (-inf) - (-inf) -> NaN on masked rows


# ----------------------------- in-kernel helpers -----------------------------

def _layernorm(x, scale, shift, eps=1e-5):
    # matches the PyTorch module: mean over last dim, UNBIASED variance (N-1)
    d = x.shape[-1]
    mean = jnp.mean(x, axis=-1, keepdims=True)
    diff = x - mean
    var = jnp.sum(diff * diff, axis=-1, keepdims=True) * (1.0 / (d - 1))
    inv_std = lax.rsqrt(var + eps)          # EUP rsqrt instead of sqrt + divide
    return scale * (diff * inv_std) + shift


def _gelu_tanh(x):
    c = jnp.sqrt(jnp.asarray(2.0 / jnp.pi, dtype=x.dtype))
    return 0.5 * x * (1.0 + jnp.tanh(c * (x + 0.044715 * x * x * x)))


# ---------------------- kernel A: LN1 + fused QKV projection -----------------

def _qkv_proj_kernel(x_ref, n1s_ref, n1b_ref, wqkv_ref, bqkv_ref,
                     q_ref, k_ref, v_ref, *, num_heads, mxu_dtype):
    x = x_ref[0]                                  # (TR, D)
    D = x.shape[-1]
    hd = D // num_heads
    xn = _layernorm(x, n1s_ref[...], n1b_ref[...])
    qkv = jnp.dot(xn.astype(mxu_dtype), wqkv_ref[...],
                  preferred_element_type=jnp.float32) + bqkv_ref[...]
    inv_sqrt_hd = 1.0 / jnp.sqrt(jnp.asarray(hd, jnp.float32))
    q_ref[0] = (qkv[:, 0:D] * inv_sqrt_hd).astype(q_ref.dtype)   # scale folded into Q once
    k_ref[0] = qkv[:, D:2 * D].astype(k_ref.dtype)
    v_ref[0] = qkv[:, 2 * D:3 * D].astype(v_ref.dtype)


# --------- kernel B: flash-style causal MHA + residual + LN2 + FFN -----------

def _attn_ffn_kernel(x_ref, q_ref, k_ref, v_ref,
                     wo_ref, bo_ref, n2s_ref, n2b_ref,
                     w1_ref, b1_ref, w2_ref, b2_ref,
                     out_ref, m_sc, l_sc, acc_sc,
                     *, num_heads, mxu_dtype):
    f32 = jnp.float32
    qi = pl.program_id(1)
    kv = pl.program_id(2)
    TQ, D = q_ref.shape[1], q_ref.shape[2]
    TK = k_ref.shape[1]
    hd = D // num_heads

    @pl.when(kv == 0)
    def _init():
        m_sc[...] = jnp.full_like(m_sc, NEG_BIG)
        l_sc[...] = jnp.zeros_like(l_sc)
        acc_sc[...] = jnp.zeros_like(acc_sc)

    # Causal early-exit: KV tiles strictly above the diagonal contribute nothing
    # (their k/v index_map also clamps to the diagonal tile, so no DMA is re-issued).
    @pl.when(kv <= qi)
    def _online_softmax_step():
        q_all = q_ref[0]                          # (TQ, D), already scaled by 1/sqrt(hd)
        k_all = k_ref[0]                          # (TK, D)
        v_all = v_ref[0]                          # (TK, D)

        # Additive causal bias in absolute coordinates; all-zero for fully visible tiles.
        row = qi * TQ + lax.broadcasted_iota(jnp.int32, (TQ, TK), 0)
        col = kv * TK + lax.broadcasted_iota(jnp.int32, (TQ, TK), 1)
        mask_bias = jnp.where(col > row, jnp.float32(NEG_BIG), jnp.float32(0.0))

        for h in range(num_heads):                # static head loop
            sl = slice(h * hd, (h + 1) * hd)
            # scores = qh @ kh^T (contract last dims; no explicit transpose materialized)
            s = lax.dot_general(q_all[:, sl], k_all[:, sl],
                                (((1,), (1,)), ((), ())),
                                preferred_element_type=f32) + mask_bias
            m_old = m_sc[:, h:h + 1]                                       # (TQ, 1)
            m_new = jnp.maximum(m_old, jnp.max(s, axis=-1, keepdims=True))
            alpha = jnp.exp(m_old - m_new)
            p = jnp.exp(s - m_new)                                         # (TQ, TK)
            l_sc[:, sl] = alpha * l_sc[:, sl] + jnp.sum(p, axis=-1, keepdims=True)
            acc_sc[:, sl] = alpha * acc_sc[:, sl] + jnp.dot(
                p.astype(mxu_dtype), v_all[:, sl], preferred_element_type=f32)
            m_sc[:, h:h + 1] = m_new

    # Diagonal tile is the last contributing KV step for this query tile:
    # finalize softmax, single K=D output projection, residual, LN2, FFN, residual.
    @pl.when(kv == qi)
    def _finalize():
        l = l_sc[...]
        inv_l = pl.reciprocal(l, approx=True)     # EUP vrcp ...
        inv_l = inv_l * (2.0 - l * inv_l)         # ... + one Newton step -> f32 accuracy
        ctx = acc_sc[...] * inv_l                 # (TQ, D)
        attn = jnp.dot(ctx.astype(mxu_dtype), wo_ref[...],
                       preferred_element_type=f32) + bo_ref[...]
        x1 = x_ref[0] + attn                      # drop_shortcut is identity (p = 0)

        x2n = _layernorm(x1, n2s_ref[...], n2b_ref[...])
        h1 = jnp.dot(x2n.astype(mxu_dtype), w1_ref[...],
                     preferred_element_type=f32) + b1_ref[...]
        h1 = _gelu_tanh(h1)
        h2 = jnp.dot(h1.astype(mxu_dtype), w2_ref[...],
                     preferred_element_type=f32) + b2_ref[...]
        out_ref[0] = (x1 + h2).astype(out_ref.dtype)


# --------------------------------- wrapper -----------------------------------

def _const_spec(w):
    """Single-buffered BlockSpec for a weight whose block index never changes."""
    nd = w.ndim
    return pl.BlockSpec(w.shape, lambda *_: (0,) * nd,
                        pipeline_mode=pl.Buffered(buffer_count=1))


def transformer_block(x, params, num_heads, *, mxu_dtype=jnp.float32, q_tile=None):
    B, T, D = x.shape
    assert D % num_heads == 0
    f32 = jnp.float32

    # Sequence tile (query and KV tiles share one size so the diagonal tile is kv == qi).
    if q_tile is not None:
        TQ = q_tile
    elif T % 256 == 0:
        TQ = 256            # match 256x256 MXU on v6e/v7x
    elif T % 128 == 0:
        TQ = 128
    else:
        TQ = T              # TODO(synk): pad/handle T not divisible by the tile size
    TK = TQ
    n_q, n_kv = T // TQ, T // TK

    # Fuse Q/K/V weights; cast MXU operands to the requested dtype (bf16 on v6e/v7x).
    wqkv = jnp.concatenate([params["wq"], params["wk"], params["wv"]], axis=1).astype(mxu_dtype)
    bqkv = jnp.concatenate([params["bq"], params["bk"], params["bv"]], axis=1).astype(f32)
    wo = params["wo"].astype(mxu_dtype)
    w1 = params["w1"].astype(mxu_dtype)
    w2 = params["w2"].astype(mxu_dtype)

    itx = x.dtype.itemsize
    itw = jnp.dtype(mxu_dtype).itemsize

    # VMEM budget clamped to the device (64 MiB on v7x, 128 MiB on v5e/v6e) with headroom.
    try:
        vmem_cap = int(pltpu.get_tpu_info().vmem_capacity_bytes)
    except Exception:
        vmem_cap = 64 * 1024 * 1024
    vmem_budget = int(vmem_cap * 0.85)

    # ------------------- kernel A: LN1 + fused QKV projection ----------------
    a_weights = [params["n1_scale"], params["n1_shift"], wqkv, bqkv]
    a_weight_bytes = sum(int(w.size) * w.dtype.itemsize for w in a_weights)
    a_block_bytes = (2 * TQ * D * itx            # x tile (double-buffered)
                     + 3 * 2 * TQ * D * itw      # q/k/v out tiles (double-buffered)
                     + a_weight_bytes)           # single-buffered weights
    vmem_a = min(vmem_budget, max(32 * 1024 * 1024, int(1.5 * a_block_bytes)))

    q, k, v = pl.pallas_call(
        functools.partial(_qkv_proj_kernel, num_heads=num_heads, mxu_dtype=mxu_dtype),
        out_shape=tuple(jax.ShapeDtypeStruct((B, T, D), mxu_dtype) for _ in range(3)),
        grid_spec=pltpu.PrefetchScalarGridSpec(
            num_scalar_prefetch=0,
            grid=(B, n_q),
            in_specs=[pl.BlockSpec((1, TQ, D), lambda b, r: (b, r, 0))]
                     + [_const_spec(w) for w in a_weights],
            out_specs=tuple(pl.BlockSpec((1, TQ, D), lambda b, r: (b, r, 0))
                            for _ in range(3)),
        ),
        compiler_params=pltpu.CompilerParams(
            dimension_semantics=("parallel", "parallel"),
            vmem_limit_bytes=vmem_a),
        cost_estimate=pl.CostEstimate(
            flops=int(2 * B * T * D * 3 * D),
            transcendentals=int(B * T),
            bytes_accessed=int(B * T * D * itx + 3 * B * T * D * itw + a_weight_bytes)),
    )(x, *a_weights)

    # ------- kernel B: flash attention + out proj + residual + LN2 + FFN -----
    b_weights = [wo, params["bo"], params["n2_scale"], params["n2_shift"],
                 w1, params["b1"], w2, params["b2"]]
    b_weight_bytes = sum(int(w.size) * w.dtype.itemsize for w in b_weights)
    b_block_bytes = (2 * TQ * D * itx            # x residual tile
                     + 2 * TQ * D * itw          # q tile
                     + 2 * 2 * TK * D * itw      # k + v tiles
                     + 2 * TQ * D * itx          # out tile
                     + (2 * TQ * D + TQ * num_heads) * 4   # m/l/acc scratch
                     + b_weight_bytes)
    vmem_b = min(vmem_budget, max(32 * 1024 * 1024, int(1.5 * b_block_bytes)))

    flops_b = int(2 * B * T * T * D              # causal scores + P@V (~half of dense)
                  + 2 * B * T * D * D            # output projection
                  + 16 * B * T * D * D)          # feed-forward
    trans_b = int(B * num_heads * T * T // 2 + B * T * (4 * D + 2))
    bytes_b = int(B * T * D * (2 * itx + 3 * itw) + b_weight_bytes)

    out = pl.pallas_call(
        functools.partial(_attn_ffn_kernel, num_heads=num_heads, mxu_dtype=mxu_dtype),
        out_shape=jax.ShapeDtypeStruct((B, T, D), x.dtype),
        grid_spec=pltpu.PrefetchScalarGridSpec(
            num_scalar_prefetch=0,
            grid=(B, n_q, n_kv),
            in_specs=[
                pl.BlockSpec((1, TQ, D), lambda b, qi, kv: (b, qi, 0)),   # x (residual)
                pl.BlockSpec((1, TQ, D), lambda b, qi, kv: (b, qi, 0)),   # q tile
                # clamp to the diagonal tile for masked steps -> no extra DMA issued
                pl.BlockSpec((1, TK, D), lambda b, qi, kv: (b, jnp.minimum(kv, qi), 0)),
                pl.BlockSpec((1, TK, D), lambda b, qi, kv: (b, jnp.minimum(kv, qi), 0)),
            ] + [_const_spec(w) for w in b_weights],
            out_specs=pl.BlockSpec((1, TQ, D), lambda b, qi, kv: (b, qi, 0)),
            scratch_shapes=[
                pltpu.VMEM((TQ, num_heads), jnp.float32),   # running max (per head)
                pltpu.VMEM((TQ, D), jnp.float32),           # running denom (per-head cols)
                pltpu.VMEM((TQ, D), jnp.float32),           # running numerator (ctx acc)
            ],
        ),
        compiler_params=pltpu.CompilerParams(
            dimension_semantics=("parallel", "parallel", "arbitrary"),
            vmem_limit_bytes=vmem_b),
        cost_estimate=pl.CostEstimate(
            flops=flops_b, transcendentals=trans_b, bytes_accessed=bytes_b),
    )(x, q, k, v, *b_weights)
    return out


# ------------------------------ pure-JAX reference ----------------------------

def transformer_block_ref(x, params, num_heads):
    B, T, D = x.shape
    hd = D // num_heads

    def ln(v, s, b):
        mean = jnp.mean(v, axis=-1, keepdims=True)
        var = jnp.sum((v - mean) ** 2, axis=-1, keepdims=True) / (D - 1)
        return s * (v - mean) / jnp.sqrt(var + 1e-5) + b

    xn = ln(x, params["n1_scale"], params["n1_shift"])
    q = xn @ params["wq"] + params["bq"]
    k = xn @ params["wk"] + params["bk"]
    v = xn @ params["wv"] + params["bv"]
    q = q.reshape(B, T, num_heads, hd).transpose(0, 2, 1, 3)
    k = k.reshape(B, T, num_heads, hd).transpose(0, 2, 1, 3)
    v = v.reshape(B, T, num_heads, hd).transpose(0, 2, 1, 3)
    scores = jnp.einsum("bhqd,bhkd->bhqk", q, k) / jnp.sqrt(hd)
    mask = jnp.triu(jnp.ones((T, T), bool), k=1)
    scores = jnp.where(mask, -jnp.inf, scores)
    p = jax.nn.softmax(scores, axis=-1)
    ctx = jnp.einsum("bhqk,bhkd->bhqd", p, v).transpose(0, 2, 1, 3).reshape(B, T, D)
    x1 = x + ctx @ params["wo"] + params["bo"]

    x2n = ln(x1, params["n2_scale"], params["n2_shift"])
    h1 = x2n @ params["w1"] + params["b1"]
    c = jnp.sqrt(2.0 / jnp.pi)
    h1 = 0.5 * h1 * (1.0 + jnp.tanh(c * (h1 + 0.044715 * h1 ** 3)))
    return x1 + h1 @ params["w2"] + params["b2"]


# ----------------------------------- main -------------------------------------

if __name__ == "__main__":
    # cfg: embed_dim=32, context_length=8, n_heads=4, drop_rate=0.0, qkv_bias=True
    B, T, D, H = 2, 8, 32, 4
    key = jax.random.PRNGKey(0)
    keys = jax.random.split(key, 16)

    def w(k, shape, scale=0.02):
        return (scale * jax.random.normal(k, shape)).astype(jnp.float32)

    params = {
        "n1_scale": jnp.ones((1, D), jnp.float32),
        "n1_shift": jnp.zeros((1, D), jnp.float32),
        "wq": w(keys[0], (D, D)), "bq": w(keys[1], (1, D)),
        "wk": w(keys[2], (D, D)), "bk": w(keys[3], (1, D)),
        "wv": w(keys[4], (D, D)), "bv": w(keys[5], (1, D)),
        "wo": w(keys[6], (D, D)), "bo": w(keys[7], (1, D)),
        "n2_scale": jnp.ones((1, D), jnp.float32),
        "n2_shift": jnp.zeros((1, D), jnp.float32),
        "w1": w(keys[8], (D, 4 * D)), "b1": w(keys[9], (1, 4 * D)),
        "w2": w(keys[10], (4 * D, D)), "b2": w(keys[11], (1, D)),
    }

    x = jax.random.normal(keys[12], (B, T, D), dtype=jnp.float32)
    ref = transformer_block_ref(x, params, num_heads=H)

    # f32 MXU operands: bitwise semantics of the module, tight tolerance.
    out = transformer_block(x, params, num_heads=H)
    out = jax.block_until_ready(out)
    assert out.shape == (B, T, D)
    assert jnp.allclose(out, ref, atol=1e-4, rtol=1e-4), (
        float(jnp.max(jnp.abs(out - ref))))

    # bf16 MXU operands (recommended on v6e/v7x), f32 accumulation: looser tolerance.
    out_bf16 = transformer_block(x, params, num_heads=H, mxu_dtype=jnp.bfloat16)
    out_bf16 = jax.block_until_ready(out_bf16)
    assert jnp.allclose(out_bf16, ref, atol=3e-2, rtol=3e-2), (
        float(jnp.max(jnp.abs(out_bf16 - ref))))

    print("KERNEL_OK")
</pallas_src>

<mosaic_0001>
module attributes {stable_mosaic.version = 11 : i64} {
  func.func @_qkv_proj_kernel(%arg0: i32, %arg1: i32, %arg2: memref<1x8x32xf32, #tpu.memory_space<vmem>>, %arg3: memref<1x32xf32, #tpu.memory_space<vmem>>, %arg4: memref<1x32xf32, #tpu.memory_space<vmem>>, %arg5: memref<32x96xf32, #tpu.memory_space<vmem>>, %arg6: memref<1x96xf32, #tpu.memory_space<vmem>>, %arg7: memref<1x8x32xf32, #tpu.memory_space<vmem>>, %arg8: memref<1x8x32xf32, #tpu.memory_space<vmem>>, %arg9: memref<1x8x32xf32, #tpu.memory_space<vmem>>) attributes {dimension_semantics = [#tpu.dimension_semantics<parallel>, #tpu.dimension_semantics<parallel>], iteration_bounds = array<i64: 2, 1>, scalar_prefetch = 0 : i64, scratch_operands = 0 : i64, tpu.core_type = #tpu.core_type<tc>, window_params = [{transform_indices = @transform_0, window_bounds = array<i64: 1, 8, 32>}, {pipeline_mode = #tpu.pipeline_mode<synchronous>, transform_indices = @transform_1, window_bounds = array<i64: 1, 32>}, {pipeline_mode = #tpu.pipeline_mode<synchronous>, transform_indices = @transform_2, window_bounds = array<i64: 1, 32>}, {pipeline_mode = #tpu.pipeline_mode<synchronous>, transform_indices = @transform_3, window_bounds = array<i64: 32, 96>}, {pipeline_mode = #tpu.pipeline_mode<synchronous>, transform_indices = @transform_4, window_bounds = array<i64: 1, 96>}, {transform_indices = @transform_5, window_bounds = array<i64: 1, 8, 32>}, {transform_indices = @transform_6, window_bounds = array<i64: 1, 8, 32>}, {transform_indices = @transform_7, window_bounds = array<i64: 1, 8, 32>}]} {
    %c0 = arith.constant 0 : index
    %c0_0 = arith.constant 0 : index
    %c0_1 = arith.constant 0 : index
    %0 = vector.load %arg2[%c0, %c0_0, %c0_1] : memref<1x8x32xf32, #tpu.memory_space<vmem>>, vector<1x8x32xf32>
    %1 = vector.shape_cast %0 : vector<1x8x32xf32> to vector<8x32xf32>
    %c0_2 = arith.constant 0 : index
    %c0_3 = arith.constant 0 : index
    %2 = vector.load %arg3[%c0_2, %c0_3] : memref<1x32xf32, #tpu.memory_space<vmem>>, vector<1x32xf32>
    %c0_4 = arith.constant 0 : index
    %c0_5 = arith.constant 0 : index
    %3 = vector.load %arg4[%c0_4, %c0_5] : memref<1x32xf32, #tpu.memory_space<vmem>>, vector<1x32xf32>
    %cst = arith.constant dense<0.000000e+00> : vector<8xf32>
    %4 = vector.multi_reduction <add>, %1, %cst [1] : vector<8x32xf32> to vector<8xf32>
    %5 = vector.shape_cast %4 : vector<8xf32> to vector<8x1xf32>
    %cst_6 = arith.constant 3.200000e+01 : f32
    %6 = vector.broadcast %cst_6 : f32 to vector<8x1xf32>
    %7 = arith.divf %5, %6 : vector<8x1xf32>
    %8 = vector.broadcast %7 : vector<8x1xf32> to vector<8x32xf32>
    %9 = arith.subf %1, %8 : vector<8x32xf32>
    %10 = arith.mulf %9, %9 : vector<8x32xf32>
    %cst_7 = arith.constant dense<0.000000e+00> : vector<8xf32>
    %11 = vector.multi_reduction <add>, %10, %cst_7 [1] : vector<8x32xf32> to vector<8xf32>
    %12 = vector.shape_cast %11 : vector<8xf32> to vector<8x1xf32>
    %cst_8 = arith.constant 0.0322580636 : f32
    %13 = vector.broadcast %cst_8 : f32 to vector<8x1xf32>
    %14 = arith.mulf %12, %13 : vector<8x1xf32>
    %cst_9 = arith.constant 9.99999974E-6 : f32
    %15 = vector.broadcast %cst_9 : f32 to vector<8x1xf32>
    %16 = arith.addf %14, %15 : vector<8x1xf32>
    %17 = math.rsqrt %16 : vector<8x1xf32>
    %18 = vector.broadcast %17 : vector<8x1xf32> to vector<8x32xf32>
    %19 = arith.mulf %9, %18 : vector<8x32xf32>
    %20 = vector.broadcast %2 : vector<1x32xf32> to vector<8x32xf32>
    %21 = arith.mulf %20, %19 : vector<8x32xf32>
    %22 = vector.broadcast %3 : vector<1x32xf32> to vector<8x32xf32>
    %23 = arith.addf %21, %22 : vector<8x32xf32>
    %c0_10 = arith.constant 0 : index
    %c0_11 = arith.constant 0 : index
    %24 = vector.load %arg5[%c0_10, %c0_11] : memref<32x96xf32, #tpu.memory_space<vmem>>, vector<32x96xf32>
    %cst_12 = arith.constant dense<0.000000e+00> : vector<8x96xf32>
    %25 = tpu.matmul %23, %24, %cst_12 {dimension_numbers = #tpu.dot_dimension_numbers<[1], [0], [0], [1], [0, 0, 1, 1], [], []>} : vector<8x32xf32>, vector<32x96xf32>, vector<8x96xf32> -> vector<8x96xf32>
    %c0_13 = arith.constant 0 : index
    %c0_14 = arith.constant 0 : index
    %26 = vector.load %arg6[%c0_13, %c0_14] : memref<1x96xf32, #tpu.memory_space<vmem>>, vector<1x96xf32>
    %27 = vector.broadcast %26 : vector<1x96xf32> to vector<8x96xf32>
    %28 = arith.addf %25, %27 : vector<8x96xf32>
    %cst_15 = arith.constant 8.000000e+00 : f32
    %29 = math.sqrt %cst_15 : f32
    %cst_16 = arith.constant 1.000000e+00 : f32
    %30 = arith.divf %cst_16, %29 : f32
    %31 = vector.extract_strided_slice %28 {offsets = [0, 0], sizes = [8, 32], strides = [1, 1]} : vector<8x96xf32> to vector<8x32xf32>
    %32 = vector.broadcast %30 : f32 to vector<8x32xf32>
    %33 = arith.mulf %31, %32 : vector<8x32xf32>
    %c0_17 = arith.constant 0 : index
    %c0_18 = arith.constant 0 : index
    %c0_19 = arith.constant 0 : index
    %34 = vector.load %arg7[%c0_17, %c0_18, %c0_19] : memref<1x8x32xf32, #tpu.memory_space<vmem>>, vector<1x8x32xf32>
    %35 = vector.shape_cast %34 : vector<1x8x32xf32> to vector<8x32xf32>
    %36 = vector.shape_cast %33 : vector<8x32xf32> to vector<1x8x32xf32>
    tpu.vector_store %arg7[%c0_17, %c0_18, %c0_19], %36 {strides = array<i32>} : memref<1x8x32xf32, #tpu.memory_space<vmem>>, vector<1x8x32xf32>,
    %37 = vector.extract_strided_slice %28 {offsets = [0, 32], sizes = [8, 32], strides = [1, 1]} : vector<8x96xf32> to vector<8x32xf32>
    %c0_20 = arith.constant 0 : index
    %c0_21 = arith.constant 0 : index
    %c0_22 = arith.constant 0 : index
    %38 = vector.load %arg8[%c0_20, %c0_21, %c0_22] : memref<1x8x32xf32, #tpu.memory_space<vmem>>, vector<1x8x32xf32>
    %39 = vector.shape_cast %38 : vector<1x8x32xf32> to vector<8x32xf32>
    %40 = vector.shape_cast %37 : vector<8x32xf32> to vector<1x8x32xf32>
    tpu.vector_store %arg8[%c0_20, %c0_21, %c0_22], %40 {strides = array<i32>} : memref<1x8x32xf32, #tpu.memory_space<vmem>>, vector<1x8x32xf32>,
    %41 = vector.extract_strided_slice %28 {offsets = [0, 64], sizes = [8, 32], strides = [1, 1]} : vector<8x96xf32> to vector<8x32xf32>
    %c0_23 = arith.constant 0 : index
    %c0_24 = arith.constant 0 : index
    %c0_25 = arith.constant 0 : index
    %42 = vector.load %arg9[%c0_23, %c0_24, %c0_25] : memref<1x8x32xf32, #tpu.memory_space<vmem>>, vector<1x8x32xf32>
    %43 = vector.shape_cast %42 : vector<1x8x32xf32> to vector<8x32xf32>
    %44 = vector.shape_cast %41 : vector<8x32xf32> to vector<1x8x32xf32>
    tpu.vector_store %arg9[%c0_23, %c0_24, %c0_25], %44 {strides = array<i32>} : memref<1x8x32xf32, #tpu.memory_space<vmem>>, vector<1x8x32xf32>,
    return
  }
  func.func @transform_0(%arg0: i32, %arg1: i32) -> (i32, i32, i32) {
    %c0_i32 = arith.constant 0 : i32
    %c0_i32_0 = arith.constant 0 : i32
    return %arg0, %arg1, %c0_i32 : i32, i32, i32
  }
  func.func @transform_1(%arg0: i32, %arg1: i32) -> (i32, i32) {
    %c0_i32 = arith.constant 0 : i32
    %c0_i32_0 = arith.constant 0 : i32
    %c0_i32_1 = arith.constant 0 : i32
    return %c0_i32, %c0_i32_0 : i32, i32
  }
  func.func @transform_2(%arg0: i32, %arg1: i32) -> (i32, i32) {
    %c0_i32 = arith.constant 0 : i32
    %c0_i32_0 = arith.constant 0 : i32
    %c0_i32_1 = arith.constant 0 : i32
    return %c0_i32, %c0_i32_0 : i32, i32
  }
  func.func @transform_3(%arg0: i32, %arg1: i32) -> (i32, i32) {
    %c0_i32 = arith.constant 0 : i32
    %c0_i32_0 = arith.constant 0 : i32
    %c0_i32_1 = arith.constant 0 : i32
    return %c0_i32, %c0_i32_0 : i32, i32
  }
  func.func @transform_4(%arg0: i32, %arg1: i32) -> (i32, i32) {
    %c0_i32 = arith.constant 0 : i32
    %c0_i32_0 = arith.constant 0 : i32
    %c0_i32_1 = arith.constant 0 : i32
    return %c0_i32, %c0_i32_0 : i32, i32
  }
  func.func @transform_5(%arg0: i32, %arg1: i32) -> (i32, i32, i32) {
    %c0_i32 = arith.constant 0 : i32
    %c0_i32_0 = arith.constant 0 : i32
    return %arg0, %arg1, %c0_i32 : i32, i32, i32
  }
  func.func @transform_6(%arg0: i32, %arg1: i32) -> (i32, i32, i32) {
    %c0_i32 = arith.constant 0 : i32
    %c0_i32_0 = arith.constant 0 : i32
    return %arg0, %arg1, %c0_i32 : i32, i32, i32
  }
  func.func @transform_7(%arg0: i32, %arg1: i32) -> (i32, i32, i32) {
    %c0_i32 = arith.constant 0 : i32
    %c0_i32_0 = arith.constant 0 : i32
    return %arg0, %arg1, %c0_i32 : i32, i32, i32
  }
}

</mosaic_0001>

<llo_original>
// kernel: tpu_custom_call.1
$region0: #{tpu_custom_call.1}
  #allocation0 [shape = 'u32[]', space=smem, size = 0x4, offset = 0x4, fixed_abs, tag = 'smem constant byte address 0x4 - core index']
  #allocation1 [shape = 'u32[144,128]{1,0:T(1,128)}', space=vmem, size = 0x12000, scoped, tag = 'internal scratch']
  %s0 = inlined_call_operand.hbm [shape: f32[2,8,32], index: 0, kind: input, shape index: {}]
  %s1 = inlined_call_operand.vmem [shape: f32[1,32], index: 1, kind: input, shape index: {}]
  %s2 = inlined_call_operand.vmem [shape: f32[1,32], index: 2, kind: input, shape index: {}]
  %s3 = inlined_call_operand.hbm [shape: f32[32,96], index: 3, kind: input, shape index: {}]
  %s4 = inlined_call_operand.vmem [shape: f32[1,96], index: 4, kind: input, shape index: {}]
  %s5 = inlined_call_operand.hbm [shape: f32[2,8,32], index: 5, kind: output, shape index: {0}]
  %s6 = inlined_call_operand.hbm [shape: f32[2,8,32], index: 6, kind: output, shape index: {1}]
  %s7 = inlined_call_operand.hbm [shape: f32[2,8,32], index: 7, kind: output, shape index: {2}]
  %8 = xla_tuple %s5, %s6, %s7
  %s9 = sld [smem:[#allocation0]]
  $region77: #{tpu_custom_call.1} parent=0
    _
  %s11 = ssub.s32 1, %s9
  %s12 = scalar_select 0, %s11, %s9
  $region1: #{tpu_custom_call.1} parent=0
    #allocation2 [shape = 'u8[8192]{0}', space=vmem, size = 0x2000, scoped, tag = 'input window, operand 0']
    #allocation3 [shape = 's32[2]{0}', space=sflag, size = 0x8, scoped, tag = 'scoped memory for tpu_custom_call.1']
    #allocation4 [shape = 's32[2]{0}', space=sflag, size = 0x8, scoped, tag = 'scoped memory for tpu_custom_call.1']
    #allocation5 [shape = 'u8[16384]{0}', space=vmem, size = 0x4000, scoped, tag = 'input window, operand 3, single buffered']
    #allocation6 [shape = 's32[1]{0}', space=sflag, size = 0x4, scoped, tag = 'scoped memory for tpu_custom_call.1']
    #allocation7 [shape = 'u8[8192]{0}', space=vmem, size = 0x2000, scoped, tag = 'output window, operand 0']
    #allocation8 [shape = 'u8[8192]{0}', space=vmem, size = 0x2000, scoped, tag = 'output window, operand 1']
    #allocation9 [shape = 's32[2]{0}', space=sflag, size = 0x8, scoped, tag = 'scoped memory for tpu_custom_call.1']
    #allocation10 [shape = 'u8[8192]{0}', space=vmem, size = 0x2000, scoped, tag = 'output window, operand 2']
    %13 = vsyncpa [#allocation3], 0
    %s14 = scalar_lea.sflag [#allocation3], 1
    %15 = vsyncpa %s14, 0
    %16 = vsyncpa [#allocation6], 0
    %17 = vsyncpa [#allocation4], 0
    %s18 = scalar_lea.sflag [#allocation4], 1
    %19 = vsyncpa %s18, 0
    %20 = vsyncpa [#allocation9], 0
    %s21 = scalar_lea.sflag [#allocation9], 1
    %22 = vsyncpa %s21, 0
    loop: start=0, step=1, limit=4
    $region2: #{tpu_custom_call.1} parent=1 // loop_pre_header
      _
    $region3: #{tpu_custom_call.1} parent=1 // loop_header
      %s24 = sphi 0, %s28
      %p25 = scmp.ge.s32.totalorder %s24, 4
      %s31 = sphi 0, %s43
      %s32 = sphi 0, %s39
      %s33 = sphi 0, %s31
      %s34 = sphi 0, %s32
      %s35 = sphi 0, %s33
      %s36 = sphi 0, %s34
      %s48 = sphi 0, %s50
      %s51 = sphi 0, %s48
      %s52 = sphi 0, %s51
      %s68 = sphi 0, %s52
      %s72 = sphi 0, %s72
      %s74 = sphi 0, %s72
      %s75 = sphi 0, %s74
      %s89 = sphi 0, %s75
      %s93 = sphi 0, %s93
      %s95 = sphi 0, %s93
      %s96 = sphi 0, %s95
      %s110 = sphi 0, %s96
      %s114 = sphi 0, %s114
      %s116 = sphi 0, %s114
      %s117 = sphi 0, %s116
      %s131 = sphi 0, %s117
      %s135 = sphi 0, %s135
      %s137 = sphi 0, %s135
      %s138 = sphi 0, %s137
      %s152 = sphi 0, %s138
      %s160 = sphi 0, %s162
      %s163 = sphi 0, %s160
      %s164 = sphi 0, %s163
      %s180 = sphi 0, %s164
      %s188 = sphi 0, %s190
      %s191 = sphi 0, %s188
      %s192 = sphi 0, %s191
      %s208 = sphi 0, %s192
      %s216 = sphi 0, %s218
      %s219 = sphi 0, %s216
      %s220 = sphi 0, %s219
      %s236 = sphi 0, %s220
    $region4: #{tpu_custom_call.1} parent=1 // loop_header_branch
      %27 = sbr.rel (%p25) target = $region8
    $region5: #{tpu_custom_call.1} parent=1 // loop_body
      %s29 = ssub.s32 %s24, 1
      %s30 = ssub.s32 %s24, 2
      %s37 = sadd.s32 1, %s32
      %p38 = scmp.ge.s32.totalorder %s37, 1
      %s39 = scalar_select %p38, 0, %s37
      %s40 = sadd.s32 1, %s31
      %s41 = scalar_select %p38, %s40, %s31
      %p42 = scmp.ge.s32.totalorder %s41, 2
      %s43 = scalar_select %p42, 0, %s41
      %s44 = ssub.s32 %s31, %s43
      %s45 = ssub.s32 %s32, %s39
      %s46 = sor.u32 %s44, %s45
      %p47 = scmp.eq.s32.totalorder %s46, 0
      %s49 = sadd.s32 %s48, 1
      %s50 = scalar_select %p47, %s48, %s49
      %p53 = pneg %p47
      %p54 = scmp.eq.s32.totalorder %s24, 1
      %p55 = por %p53, %p54
      %p56 = scmp.ne.s32.totalorder %s48, %s51
      %p57 = scmp.eq.s32.totalorder %s24, 0
      %p58 = por %p56, %p57
      %p59 = scmp.ne.s32.totalorder %s48, %s51
      %p60 = scmp.eq.s32.totalorder %s29, 1
      %p61 = por %p59, %p60
      %p62 = scmp.ne.s32.totalorder %s51, %s52
      %p63 = scmp.eq.s32.totalorder %s29, 0
      %p64 = por %p62, %p63
      %p65 = scmp.ne.s32.totalorder %s51, %s52
      %p66 = scmp.eq.s32.totalorder %s30, 1
      %p67 = por %p65, %p66
      %p69 = scmp.ne.s32.totalorder %s52, %s68
      %p70 = scmp.eq.s32.totalorder %s30, 0
      %p71 = por %p69, %p70
      %s73 = sadd.s32 %s72, 1
      %p76 = scmp.eq.s32.totalorder %s24, 1
      %p77 = scmp.ne.s32.totalorder %s72, %s74
      %p78 = scmp.eq.s32.totalorder %s24, 0
      %p79 = por %p77, %p78
      %p80 = scmp.ne.s32.totalorder %s72, %s74
      %p81 = scmp.eq.s32.totalorder %s29, 1
      %p82 = por %p80, %p81
      %p83 = scmp.ne.s32.totalorder %s74, %s75
      %p84 = scmp.eq.s32.totalorder %s29, 0
      %p85 = por %p83, %p84
      %p86 = scmp.ne.s32.totalorder %s74, %s75
      %p87 = scmp.eq.s32.totalorder %s30, 1
      %p88 = por %p86, %p87
      %p90 = scmp.ne.s32.totalorder %s75, %s89
      %p91 = scmp.eq.s32.totalorder %s30, 0
      %p92 = por %p90, %p91
      %s94 = sadd.s32 %s93, 1
      %p97 = scmp.eq.s32.totalorder %s24, 1
      %p98 = scmp.ne.s32.totalorder %s93, %s95
      %p99 = scmp.eq.s32.totalorder %s24, 0
      %p100 = por %p98, %p99
      %p101 = scmp.ne.s32.totalorder %s93, %s95
      %p102 = scmp.eq.s32.totalorder %s29, 1
      %p103 = por %p101, %p102
      %p104 = scmp.ne.s32.totalorder %s95, %s96
      %p105 = scmp.eq.s32.totalorder %s29, 0
      %p106 = por %p104, %p105
      %p107 = scmp.ne.s32.totalorder %s95, %s96
      %p108 = scmp.eq.s32.totalorder %s30, 1
      %p109 = por %p107, %p108
      %p111 = scmp.ne.s32.totalorder %s96, %s110
      %p112 = scmp.eq.s32.totalorder %s30, 0
      %p113 = por %p111, %p112
      %s115 = sadd.s32 %s114, 1
      %p118 = scmp.eq.s32.totalorder %s24, 1
      %p119 = scmp.ne.s32.totalorder %s114, %s116
      %p120 = scmp.eq.s32.totalorder %s24, 0
      %p121 = por %p119, %p120
      %p122 = scmp.ne.s32.totalorder %s114, %s116
      %p123 = scmp.eq.s32.totalorder %s29, 1
      %p124 = por %p122, %p123
      %p125 = scmp.ne.s32.totalorder %s116, %s117
      %p126 = scmp.eq.s32.totalorder %s29, 0
      %p127 = por %p125, %p126
      %p128 = scmp.ne.s32.totalorder %s116, %s117
      %p129 = scmp.eq.s32.totalorder %s30, 1
      %p130 = por %p128, %p129
      %p132 = scmp.ne.s32.totalorder %s117, %s131
      %p133 = scmp.eq.s32.totalorder %s30, 0
      %p134 = por %p132, %p133
      %s136 = sadd.s32 %s135, 1
      %p139 = scmp.eq.s32.totalorder %s24, 1
      %p140 = scmp.ne.s32.totalorder %s135, %s137
      %p141 = scmp.eq.s32.totalorder %s24, 0
      %p142 = por %p140, %p141
      %p143 = scmp.ne.s32.totalorder %s135, %s137
      %p144 = scmp.eq.s32.totalorder %s29, 1
      %p145 = por %p143, %p144
      %p146 = scmp.ne.s32.totalorder %s137, %s138
      %p147 = scmp.eq.s32.totalorder %s29, 0
      %p148 = por %p146, %p147
      %p149 = scmp.ne.s32.totalorder %s137, %s138
      %p150 = scmp.eq.s32.totalorder %s30, 1
      %p151 = por %p149, %p150
      %p153 = scmp.ne.s32.totalorder %s138, %s152
      %p154 = scmp.eq.s32.totalorder %s30, 0
      %p155 = por %p153, %p154
      %s156 = ssub.s32 %s31, %s43
      %s157 = ssub.s32 %s32, %s39
      %s158 = sor.u32 %s156, %s157
      %p159 = scmp.eq.s32.totalorder %s158, 0
      %s161 = sadd.s32 %s160, 1
      %s162 = scalar_select %p159, %s160, %s161
      %p165 = pneg %p159
      %p166 = scmp.eq.s32.totalorder %s24, 1
      %p167 = por %p165, %p166
      %p168 = scmp.ne.s32.totalorder %s160, %s163
      %p169 = scmp.eq.s32.totalorder %s24, 0
      %p170 = por %p168, %p169
      %p171 = scmp.ne.s32.totalorder %s160, %s163
      %p172 = scmp.eq.s32.totalorder %s29, 1
      %p173 = por %p171, %p172
      %p174 = scmp.ne.s32.totalorder %s163, %s164
      %p175 = scmp.eq.s32.totalorder %s29, 0
      %p176 = por %p174, %p175
      %p177 = scmp.ne.s32.totalorder %s163, %s164
      %p178 = scmp.eq.s32.totalorder %s30, 1
      %p179 = por %p177, %p178
      %p181 = scmp.ne.s32.totalorder %s164, %s180
      %p182 = scmp.eq.s32.totalorder %s30, 0
      %p183 = por %p181, %p182
      %s184 = ssub.s32 %s31, %s43
      %s185 = ssub.s32 %s32, %s39
      %s186 = sor.u32 %s184, %s185
      %p187 = scmp.eq.s32.totalorder %s186, 0
      %s189 = sadd.s32 %s188, 1
      %s190 = scalar_select %p187, %s188, %s189
      %p193 = pneg %p187
      %p194 = scmp.eq.s32.totalorder %s24, 1
      %p195 = por %p193, %p194
      %p196 = scmp.ne.s32.totalorder %s188, %s191
      %p197 = scmp.eq.s32.totalorder %s24, 0
      %p198 = por %p196, %p197
      %p199 = scmp.ne.s32.totalorder %s188, %s191
      %p200 = scmp.eq.s32.totalorder %s29, 1
      %p201 = por %p199, %p200
      %p202 = scmp.ne.s32.totalorder %s191, %s192
      %p203 = scmp.eq.s32.totalorder %s29, 0
      %p204 = por %p202, %p203
      %p205 = scmp.ne.s32.totalorder %s191, %s192
      %p206 = scmp.eq.s32.totalorder %s30, 1
      %p207 = por %p205, %p206
      %p209 = scmp.ne.s32.totalorder %s192, %s208
      %p210 = scmp.eq.s32.totalorder %s30, 0
      %p211 = por %p209, %p210
      %s212 = ssub.s32 %s31, %s43
      %s213 = ssub.s32 %s32, %s39
      %s214 = sor.u32 %s212, %s213
      %p215 = scmp.eq.s32.totalorder %s214, 0
      %s217 = sadd.s32 %s216, 1
      %s218 = scalar_select %p215, %s216, %s217
      %p221 = pneg %p215
      %p222 = scmp.eq.s32.totalorder %s24, 1
      %p223 = por %p221, %p222
      %p224 = scmp.ne.s32.totalorder %s216, %s219
      %p225 = scmp.eq.s32.totalorder %s24, 0
      %p226 = por %p224, %p225
      %p227 = scmp.ne.s32.totalorder %s216, %s219
      %p228 = scmp.eq.s32.totalorder %s29, 1
      %p229 = por %p227, %p228
      %p230 = scmp.ne.s32.totalorder %s219, %s220
      %p231 = scmp.eq.s32.totalorder %s29, 0
      %p232 = por %p230, %p231
      %p233 = scmp.ne.s32.totalorder %s219, %s220
      %p234 = scmp.eq.s32.totalorder %s30, 1
      %p235 = por %p233, %p234
      %p237 = scmp.ne.s32.totalorder %s220, %s236
      %p238 = scmp.eq.s32.totalorder %s30, 0
      %p239 = por %p237, %p238
      %p240 = scmp.le.s32.totalorder 1, %s24
      %p241 = scmp.lt.s32.totalorder %s24, 3
      %p242 = pnand %p240, %p241
      %p243 = pneg %p242
      // Predicated region
      $region9: #{tpu_custom_call.1} parent=5 // pred_check
        _
      $region10: #{tpu_custom_call.1} parent=5 // pred_check_branch
        %245 = sbr.rel (%p242) target = $region12
      $region11: #{tpu_custom_call.1} parent=5 // pred_region
        %s246 = ssub.s32 %s24, 1
        // Predicated region
        $region13: #{tpu_custom_call.1} parent=11 // pred_check
          %p247 = pneg %p85
        $region14: #{tpu_custom_call.1} parent=11 // pred_check_branch
          %249 = sbr.rel (%p247) target = $region16
        $region15: #{tpu_custom_call.1} parent=11 // pred_region
          _
        $region16: #{tpu_custom_call.1} parent=11 // pred_fallthru
          _
        // Predicated region
        $region17: #{tpu_custom_call.1} parent=11 // pred_check
          %p250 = pneg %p106
        $region18: #{tpu_custom_call.1} parent=11 // pred_check_branch
          %252 = sbr.rel (%p250) target = $region20
        $region19: #{tpu_custom_call.1} parent=11 // pred_region
          _
        $region20: #{tpu_custom_call.1} parent=11 // pred_fallthru
          _
        // Predicated region
        $region21: #{tpu_custom_call.1} parent=11 // pred_check
          %p253 = pneg %p127
        $region22: #{tpu_custom_call.1} parent=11 // pred_check_branch
          %255 = sbr.rel (%p253) target = $region24
        $region23: #{tpu_custom_call.1} parent=11 // pred_region
          %s257 = ssub.s32 512, 512
          %258 = vsyncadd [#allocation6], %s257
          %s259 = sshll.u32 [#allocation5], 4
          %s260 = int_to_ptr.vmem [resolvable:$true] %s259
          %265 = dma.hbm_to_vmem [thread:$0]  %s3, 512, %s260, [#allocation6], 128, 128, 8
        $region24: #{tpu_custom_call.1} parent=11 // pred_fallthru
          _
        // Predicated region
        $region25: #{tpu_custom_call.1} parent=11 // pred_check
          %p266 = pneg %p148
        $region26: #{tpu_custom_call.1} parent=11 // pred_check_branch
          %268 = sbr.rel (%p266) target = $region28
        $region27: #{tpu_custom_call.1} parent=11 // pred_region
          _
        $region28: #{tpu_custom_call.1} parent=11 // pred_fallthru
          _
      $region12: #{tpu_custom_call.1} parent=5 // pred_fallthru
        _
      %p269 = scmp.lt.s32.totalorder %s24, 2
      // Predicated region
      $region29: #{tpu_custom_call.1} parent=5 // pred_check
        %p270 = pneg %p269
      $region30: #{tpu_custom_call.1} parent=5 // pred_check_branch
        %272 = sbr.rel (%p270) target = $region32
      $region31: #{tpu_custom_call.1} parent=5 // pred_region
        // Predicated region
        $region33: #{tpu_custom_call.1} parent=31 // pred_check
          %p273 = pneg %p58
        $region34: #{tpu_custom_call.1} parent=31 // pred_check_branch
          %275 = sbr.rel (%p273) target = $region36
        $region35: #{tpu_custom_call.1} parent=31 // pred_region
          %s276 = sand.u32 %s48, 1
          %s277 = scalar_lea.sflag [#allocation3], %s276
          %s278 = sand.u32 %s48, 1
          %s279 = smul.addr %s278, 8
          %s280 = scalar_lea.vmem [#allocation2], %s279
          %s282 = ssub.s32 128, 128
          %283 = vsyncadd %s277, %s282
          %s284 = sadd.s32 %s32, %s31
          %s285 = smul.addr %s284, 128
          %s286 = scalar_lea.hbm %s0, %s285
          %s288 = sshll.u32 %s280, 4
          %s289 = int_to_ptr.vmem [resolvable:$true] %s288
          %291 = dma.hbm_to_vmem [thread:$0]  %s286, 128, %s289, %s277
        $region36: #{tpu_custom_call.1} parent=31 // pred_fallthru
          _
      $region32: #{tpu_custom_call.1} parent=5 // pred_fallthru
        _
      %p292 = scmp.le.s32.totalorder 1, %s24
      %p293 = scmp.lt.s32.totalorder %s24, 3
      %p294 = pnand %p292, %p293
      %p295 = pneg %p294
      // Predicated region
      $region37: #{tpu_custom_call.1} parent=5 // pred_check
        _
      $region38: #{tpu_custom_call.1} parent=5 // pred_check_branch
        %297 = sbr.rel (%p294) target = $region40
      $region39: #{tpu_custom_call.1} parent=5 // pred_region
        %s298 = ssub.s32 %s24, 1
        %s299 = sand.u32 %s51, 1
        %s300 = scalar_lea.sflag [#allocation3], %s299
        %s301 = sand.u32 %s51, 1
        %s302 = smul.addr %s301, 8
        %s303 = scalar_lea.vmem [#allocation2], %s302
        // Predicated region
        $region41: #{tpu_custom_call.1} parent=39 // pred_check
          %p304 = pneg %p64
        $region42: #{tpu_custom_call.1} parent=39 // pred_check_branch
          %306 = sbr.rel (%p304) target = $region44
        $region43: #{tpu_custom_call.1} parent=39 // pred_region
          %307 = dma.done %s300, 128
        $region44: #{tpu_custom_call.1} parent=39 // pred_fallthru
          _
        // Predicated region
        $region45: #{tpu_custom_call.1} parent=39 // pred_check
          %p308 = pneg %p127
        $region46: #{tpu_custom_call.1} parent=39 // pred_check_branch
          %310 = sbr.rel (%p308) target = $region48
        $region47: #{tpu_custom_call.1} parent=39 // pred_region
          %311 = dma.done [#allocation6], 512
        $region48: #{tpu_custom_call.1} parent=39 // pred_fallthru
          _
        %s312 = sand.u32 %s51, 1
        %s313 = scalar_lea.sflag [#allocation3], %s312
        %s314 = sand.u32 %s51, 1
        %s315 = smul.addr %s314, 8
        %s316 = scalar_lea.vmem [#allocation2], %s315
        %p317 = pneg %p64
        %p318 = pneg %p61
        %p319 = pneg %p85
        %p320 = pneg %p82
        %p321 = pneg %p106
        %p322 = pneg %p103
        %p323 = pneg %p127
        %p324 = pneg %p124
        %p325 = pneg %p148
        %p326 = pneg %p145
        %p327 = pneg %p176
        %p328 = pneg %p173
        %s329 = sand.u32 %s163, 1
        %s330 = scalar_lea.sflag [#allocation4], %s329
        %s331 = sand.u32 %s163, 1
        %s332 = smul.addr %s331, 8
        %s333 = scalar_lea.vmem [#allocation7], %s332
        %p334 = pneg %p204
        %p335 = pneg %p201
        %s336 = sand.u32 %s29, 1
        %s337 = scalar_lea.sflag [#allocation9], %s336
        %s338 = sand.u32 %s191, 1
        %s339 = smul.addr %s338, 8
        %s340 = scalar_lea.vmem [#allocation8], %s339
        %p341 = pneg %p232
        %p342 = pneg %p229
        %s343 = sand.u32 %s29, 1
        %s344 = scalar_lea.sflag [#allocation9], %s343
        %s345 = sand.u32 %s219, 1
        %s346 = smul.addr %s345, 8
        %s347 = scalar_lea.vmem [#allocation10], %s346
        %v348 = vld [vmem:[%s303] sm:$0xff]
        %v349 = vld [vmem:[%s1] sm:$0x1]
        %v350 = vld [vmem:[%s2] sm:$0x1]
        %vm351 = vcmask 261120
        %v352 = vsel %vm351, %v348, 0.0
        %353 = vadd.xlane.f32.xlu0 %v352
        %v354 = vpop.xlane.xlu0 %353
        %v355 = vrcp.pop 32.0
        %v356 = vmul.f32 %v354, %v355
        %v357 = vsub.f32 %v348, %v356
        %v358 = vmul.f32 %v357, %v357
        %v359 = vsel %vm351, %v358, 0.0
        %360 = vadd.xlane.f32.xlu0 %v359
        %v361 = vpop.xlane.xlu0 %360
        %v362 = vmul.f32 %v361, 0.032258064
        %v363 = vadd.f32 %v362, 1e-05
        %v364 = vrsqrt.pop %v363
        %v365 = vmul.f32 %v357, %v364
        %v367 = vlaneseq
        %v368 = vshrl.u32 %v367, 7
        %v369 = vsub.s32 0, %v368
        %v370 = vrot.slane %v349, %v369
        %v372 = vmul.f32 %v370, %v365
        %v374 = vlaneseq
        %v375 = vshrl.u32 %v374, 7
        %v376 = vsub.s32 0, %v375
        %v377 = vrot.slane %v350, %v376
        %v379 = vadd.f32 %v372, %v377
        %v380 = vld [vmem:[#allocation5] sm:$0xff]
        %v381 = vld [vmem:[#allocation5 + $0x8] sm:$0xff]
        %v382 = vld [vmem:[#allocation5 + $0x10] sm:$0xff]
        %v383 = vld [vmem:[#allocation5 + $0x18] sm:$0xff]
        %v384 = vld [vmem:[%s4] sm:$0x1]
        %v386 = vlaneseq
        %v387 = vshrl.u32 %v386, 7
        %v388 = vsub.s32 0, %v387
        %v389 = vrot.slane %v384, %v388
        %v392 = vsel %vm351, %v379, 0
        %394 = vmatprep.subr.mxu0 0.0
        %395 = vmatpush1.msra.mxu0 %v380
        %396 = vmatprep.subr.mxu0 0.0
        %397 = vmatpush1.msra.mxu0 %v381
        %398 = vmatprep.subr.mxu0 0.0
        %399 = vmatpush1.msra.mxu0 %v382
        %400 = vmatprep.subr.mxu0 0.0
        %401 = vmatpush1.msra.mxu0 %v383
        %402 = vmatprep.subr.mxu0 0.0
        %403 = vmatpush1.msra.mxu0 0.0
        %404 = vmatprep.subr.mxu0 0.0
        %405 = vmatpush1.msra.mxu0 0.0
        %406 = vmatprep.subr.mxu0 0.0
        %407 = vmatpush1.msra.mxu0 0.0
        %408 = vmatprep.subr.mxu0 0.0
        %409 = vmatpush1.msra.mxu0 0.0
        %410 = vmatprep.subr.mxu0 0.0
        %411 = vmatpush1.msra.mxu0 0.0
        %412 = vmatprep.subr.mxu0 0.0
        %413 = vmatpush1.msra.mxu0 0.0
        %414 = vmatprep.subr.mxu0 0.0
        %415 = vmatpush1.msra.mxu0 0.0
        %416 = vmatprep.subr.mxu0 0.0
        %417 = vmatpush1.msra.mxu0 0.0
        %418 = vmatprep.subr.mxu0 0.0
        %419 = vmatpush1.msra.mxu0 0.0
        %420 = vmatprep.subr.mxu0 0.0
        %421 = vmatpush1.msra.mxu0 0.0
        %422 = vmatprep.subr.mxu0 0.0
        %423 = vmatpush1.msra.mxu0 0.0
        %424 = vmatprep.subr.mxu0 0.0
        %425 = vmatpush1.msra.mxu0 0.0
        %426 = vmatprep.subr.mxu0 0.0
        %427 = vmatpush1.msra.mxu0 0.0
        %428 = vmatprep.subr.mxu0 0.0
        %429 = vmatpush1.msra.mxu0 0.0
        %430 = vmatprep.subr.mxu0 0.0
        %431 = vmatpush1.msra.mxu0 0.0
        %432 = vmatprep.subr.mxu0 0.0
        %433 = vmatpush1.msra.mxu0 0.0
        %434 = vmatprep.subr.mxu0 0.0
        %435 = vmatpush1.msra.mxu0 0.0
        %436 = vmatprep.subr.mxu0 0.0
        %437 = vmatpush1.msra.mxu0 0.0
        %438 = vmatprep.subr.mxu0 0.0
        %439 = vmatpush1.msra.mxu0 0.0
        %440 = vmatprep.subr.mxu0 0.0
        %441 = vmatpush1.msra.mxu0 0.0
        %442 = vmatprep.subr.mxu0 0.0
        %443 = vmatpush1.msra.mxu0 0.0
        %444 = vmatprep.subr.mxu0 0.0
        %445 = vmatpush1.msra.mxu0 0.0
        %446 = vmatprep.subr.mxu0 0.0
        %447 = vmatpush1.msra.mxu0 0.0
        %448 = vmatprep.subr.mxu0 0.0
        %449 = vmatpush1.msra.mxu0 0.0
        %450 = vmatprep.subr.mxu0 0.0
        %451 = vmatpush1.msra.mxu0 0.0
        %452 = vmatprep.subr.mxu0 0.0
        %453 = vmatpush1.msra.mxu0 0.0
        %454 = vmatprep.subr.mxu0 0.0
        %455 = vmatpush1.msra.mxu0 0.0
        %456 = vmatprep.subr.mxu0 0.0
        %457 = vmatpush1.msra.mxu0 0.0
        %458 = vmatprep.mubr.f32.mxu0 0.0
        %459 = vmatmul.mubr.f32.gmra.mrb[0].mxu0 %v392
        %v460 = vpop.f32.mrb[0].mxu0
        %v461 = vadd.f32 %v389, %v460
        %v462 = vpop.f32.mrb[0].mxu0
        %463 = vdwg.mxu0
        %v464 = vmul.f32 %v461, 0.35355338
        %465 = vst.msk [vmem:[%s333] sm:$0xff] %vm351, %v464
        %467 = vrot.lane.b32.xlu0 %v461, 96
        %v468 = vpop.permute.xlu0 %467
        %470 = vst.msk [vmem:[%s340] sm:$0xff] %vm351, %v468
        %471 = vrot.lane.b32.xlu0 %v461, 64
        %v472 = vpop.permute.xlu0 %471
        %474 = vst.msk [vmem:[%s347] sm:$0xff] %vm351, %v472
        %s475 = sand.u32 %s163, 1
        %s476 = scalar_lea.sflag [#allocation4], %s475
        %s477 = sand.u32 %s163, 1
        %s478 = smul.addr %s477, 8
        %s479 = scalar_lea.vmem [#allocation7], %s478
        %s480 = sand.u32 %s29, 1
        %s481 = scalar_lea.sflag [#allocation9], %s480
        %s482 = sand.u32 %s191, 1
        %s483 = smul.addr %s482, 8
        %s484 = scalar_lea.vmem [#allocation8], %s483
        %s485 = sand.u32 %s29, 1
        %s486 = scalar_lea.sflag [#allocation9], %s485
        %s487 = sand.u32 %s219, 1
        %s488 = smul.addr %s487, 8
        %s489 = scalar_lea.vmem [#allocation10], %s488
        // Predicated region
        $region49: #{tpu_custom_call.1} parent=39 // pred_check
          %p490 = pneg %p173
        $region50: #{tpu_custom_call.1} parent=39 // pred_check_branch
          %492 = sbr.rel (%p490) target = $region52
        $region51: #{tpu_custom_call.1} parent=39 // pred_region
          %s494 = ssub.s32 128, 128
          %495 = vsyncadd %s476, %s494
          %s496 = sadd.s32 %s34, %s33
          %s497 = smul.addr %s496, 128
          %s498 = scalar_lea.hbm %s5, %s497
          %s500 = sshll.u32 %s479, 4
          %s501 = int_to_ptr.vmem [resolvable:$true] %s500
          %503 = dma.vmem_to_hbm [thread:$0]  %s501, 128, %s498, %s476
        $region52: #{tpu_custom_call.1} parent=39 // pred_fallthru
          _
        // Predicated region
        $region53: #{tpu_custom_call.1} parent=39 // pred_check
          %p504 = pneg %p201
        $region54: #{tpu_custom_call.1} parent=39 // pred_check_branch
          %506 = sbr.rel (%p504) target = $region56
        $region55: #{tpu_custom_call.1} parent=39 // pred_region
          %s508 = ssub.s32 128, 128
          %509 = vsyncadd %s481, %s508
          %s510 = sadd.s32 %s34, %s33
          %s511 = smul.addr %s510, 128
          %s512 = scalar_lea.hbm %s6, %s511
          %s514 = sshll.u32 %s484, 4
          %s515 = int_to_ptr.vmem [resolvable:$true] %s514
          %517 = dma.vmem_to_hbm [thread:$0]  %s515, 128, %s512, %s481
        $region56: #{tpu_custom_call.1} parent=39 // pred_fallthru
          _
        // Predicated region
        $region57: #{tpu_custom_call.1} parent=39 // pred_check
          %p518 = pneg %p229
        $region58: #{tpu_custom_call.1} parent=39 // pred_check_branch
          %520 = sbr.rel (%p518) target = $region60
        $region59: #{tpu_custom_call.1} parent=39 // pred_region
          %s522 = ssub.s32 128, 128
          %523 = vsyncadd %s486, %s522
          %s524 = sadd.s32 %s34, %s33
          %s525 = smul.addr %s524, 128
          %s526 = scalar_lea.hbm %s7, %s525
          %s528 = sshll.u32 %s489, 4
          %s529 = int_to_ptr.vmem [resolvable:$true] %s528
          %531 = dma.vmem_to_hbm [thread:$0]  %s529, 128, %s526, %s486
        $region60: #{tpu_custom_call.1} parent=39 // pred_fallthru
          _
      $region40: #{tpu_custom_call.1} parent=5 // pred_fallthru
        _
      %p532 = scmp.le.s32.totalorder 2, %s24
      // Predicated region
      $region61: #{tpu_custom_call.1} parent=5 // pred_check
        %p533 = pneg %p532
      $region62: #{tpu_custom_call.1} parent=5 // pred_check_branch
        %535 = sbr.rel (%p533) target = $region64
      $region63: #{tpu_custom_call.1} parent=5 // pred_region
        %s536 = ssub.s32 %s24, 2
        // Predicated region
        $region65: #{tpu_custom_call.1} parent=63 // pred_check
          %p537 = pneg %p179
        $region66: #{tpu_custom_call.1} parent=63 // pred_check_branch
          %539 = sbr.rel (%p537) target = $region68
        $region67: #{tpu_custom_call.1} parent=63 // pred_region
          %s540 = sand.u32 %s164, 1
          %s541 = scalar_lea.sflag [#allocation4], %s540
          %s542 = sand.u32 %s164, 1
          %s543 = smul.addr %s542, 8
          %s544 = scalar_lea.vmem [#allocation7], %s543
          %545 = dma.done %s541, 128
        $region68: #{tpu_custom_call.1} parent=63 // pred_fallthru
          _
        // Predicated region
        $region69: #{tpu_custom_call.1} parent=63 // pred_check
          %p546 = pneg %p207
        $region70: #{tpu_custom_call.1} parent=63 // pred_check_branch
          %548 = sbr.rel (%p546) target = $region72
        $region71: #{tpu_custom_call.1} parent=63 // pred_region
          %s549 = sand.u32 %s30, 1
          %s550 = scalar_lea.sflag [#allocation9], %s549
          %s551 = sand.u32 %s192, 1
          %s552 = smul.addr %s551, 8
          %s553 = scalar_lea.vmem [#allocation8], %s552
          %554 = dma.done %s550, 128
        $region72: #{tpu_custom_call.1} parent=63 // pred_fallthru
          _
        // Predicated region
        $region73: #{tpu_custom_call.1} parent=63 // pred_check
          %p555 = pneg %p235
        $region74: #{tpu_custom_call.1} parent=63 // pred_check_branch
          %557 = sbr.rel (%p555) target = $region76
        $region75: #{tpu_custom_call.1} parent=63 // pred_region
          %s558 = sand.u32 %s30, 1
          %s559 = scalar_lea.sflag [#allocation9], %s558
          %s560 = sand.u32 %s220, 1
          %s561 = smul.addr %s560, 8
          %s562 = scalar_lea.vmem [#allocation10], %s561
          %563 = dma.done %s559, 128
        $region76: #{tpu_custom_call.1} parent=63 // pred_fallthru
          _
      $region64: #{tpu_custom_call.1} parent=5 // pred_fallthru
        _
    $region6: #{tpu_custom_call.1} parent=1 // loop_footer
      %s28 = sadd.s32 1, %s24
    $region7: #{tpu_custom_call.1} parent=1 // loop_footer_branch
      %23 = sbr.rel target = $region3
    $region8: #{tpu_custom_call.1} parent=1 // loop_exit
      _
    %564 = vsyncpa [#allocation3], 1
    %s565 = scalar_lea.sflag [#allocation3], 1
    %566 = vsyncpa %s565, 1
    %567 = vsyncpa [#allocation6], 1
    %568 = vsyncpa [#allocation4], 1
    %s569 = scalar_lea.sflag [#allocation4], 1
    %570 = vsyncpa %s569, 1
    %571 = vsyncpa [#allocation9], 1
    %s572 = scalar_lea.sflag [#allocation9], 1
    %573 = vsyncpa %s572, 1

</llo_original>
